<compile_context>
chip_gen: v5e
topology: v5e:2x2
jax: 0.10.0
libtpu: 0.0.40
codegen_flags: <defaults>
</compile_context>

<pallas_src>
import functools
import numpy as np
import jax
import jax.numpy as jnp
from jax.experimental import pallas as pl
from jax.experimental.pallas import tpu as pltpu


def _grouped_gemm_kernel(gid_ref, a_ref, b_ref, o_ref, acc_ref, *, b_is_nk):
    """One (row-tile i, n-tile j, k-tile k) grid step.

    a_ref : (tm, tk)     activation slice
    b_ref : (1, tn, tk)  if b_is_nk (column-major expert weights)
            (1, tk, tn)  otherwise
    o_ref : (tm, tn)
    acc   : (tm, tn) f32 accumulator, resident across the k axis
    """
    k = pl.program_id(2)

    @pl.when(k == 0)
    def _():
        acc_ref[...] = jnp.zeros_like(acc_ref)

    # Default MXU precision (bf16 passes, f32 accumulate). HIGHEST dropped on
    # purpose: it forces multi-pass matmuls and 3-6x lower MXU throughput.
    if b_is_nk:
        contrib = jax.lax.dot_general(
            a_ref[...], b_ref[0],
            dimension_numbers=(((1,), (1,)), ((), ())),
            preferred_element_type=jnp.float32)
    else:
        contrib = jax.lax.dot_general(
            a_ref[...], b_ref[0],
            dimension_numbers=(((1,), (0,)), ((), ())),
            preferred_element_type=jnp.float32)
    acc_ref[...] += contrib

    @pl.when(k == pl.num_programs(2) - 1)
    def _():
        o_ref[...] = acc_ref[...].astype(o_ref.dtype)


def _grouped_gemm_padded(a_pad, b, group_ids, out_dtype, *, tm, tn, tk, b_is_nk):
    """Runs the Pallas grouped GEMM on segment-padded rows."""
    M_pad, K = a_pad.shape
    if b_is_nk:
        E, N, _ = b.shape
        b_spec = pl.BlockSpec((1, tn, tk), lambda i, j, k, gid: (gid[i], j, k))
    else:
        E, _, N = b.shape
        b_spec = pl.BlockSpec((1, tk, tn), lambda i, j, k, gid: (gid[i], k, j))

    grid = (M_pad // tm, N // tn, K // tk)

    # VMEM budget: double-buffered A/B/C tiles + f32 accumulator, with
    # headroom, kept well under v7x's 64 MiB physical VMEM per TensorCore.
    out_itemsize = jnp.dtype(out_dtype).itemsize
    need = (2 * (tm * tk * a_pad.dtype.itemsize
                 + tn * tk * b.dtype.itemsize
                 + tm * tn * out_itemsize)
            + tm * tn * 4)
    vmem_limit = int(min(max(4 * need, 32 << 20), 48 << 20))

    cost = pl.CostEstimate(
        flops=2 * M_pad * N * K,
        transcendentals=0,
        bytes_accessed=(a_pad.size * a_pad.dtype.itemsize
                        + (M_pad // tm) * N * K * b.dtype.itemsize
                        + M_pad * N * out_itemsize))

    return pl.pallas_call(
        functools.partial(_grouped_gemm_kernel, b_is_nk=b_is_nk),
        out_shape=jax.ShapeDtypeStruct((M_pad, N), out_dtype),
        grid_spec=pltpu.PrefetchScalarGridSpec(
            num_scalar_prefetch=1,
            grid=grid,
            in_specs=[
                pl.BlockSpec((tm, tk), lambda i, j, k, gid: (i, k)),
                b_spec,
            ],
            out_specs=pl.BlockSpec((tm, tn), lambda i, j, k, gid: (i, j)),
            scratch_shapes=[pltpu.VMEM((tm, tn), jnp.float32)],
        ),
        compiler_params=pltpu.CompilerParams(
            dimension_semantics=("parallel", "parallel", "arbitrary"),
            vmem_limit_bytes=vmem_limit),
        cost_estimate=cost,
    )(group_ids, a_pad, b)


def _pick_tile(dim, want, align=128):
    """Largest multiple of `align` that divides `dim` and is <= `want`;
    falls back to the full extent if `dim` is not a multiple of `align`."""
    if dim % align != 0:
        return dim
    t = max((min(want, dim) // align) * align, align)
    while dim % t:
        t -= align
    return t


class GroupedGemmRunner:
    """JAX/Pallas equivalent of sglang's simplified GroupedGemmRunner."""

    def __init__(self, tm=128, tn=256, tk=512):
        # tm trades MXU utilization against per-segment padding waste:
        # 128-256 for prefill-sized expert groups; pass a smaller tm for
        # many tiny decode-sized groups.
        self.tm, self.tn, self.tk = tm, tn, tk

    def __call__(self, a, b, c, batch_size, weight_column_major,
                 seg_indptr=None, weight_indices=None,
                 use_fp8_w8a8=False, scale_a=None, scale_b=None,
                 block_shape=None):
        # TODO(synk): fp8 w8a8 path with block-wise scales not implemented.
        assert not use_fp8_w8a8, "fp8 w8a8 path not implemented"

        M, K = a.shape
        if weight_column_major:
            E, N, Kb = b.shape
        else:
            E, Kb, N = b.shape
        assert Kb == K, "weight K dim must match activation K"

        tm = max(8, (int(self.tm) // 8) * 8)
        tn = _pick_tile(N, self.tn)
        tk = _pick_tile(K, self.tk)

        # ---- routing metadata (vectorized numpy; for production feed host
        # ints to keep dispatch fully asynchronous) ----
        seg = np.asarray(seg_indptr, dtype=np.int64)
        widx = (np.arange(batch_size, dtype=np.int64) if weight_indices is None
                else np.asarray(weight_indices, dtype=np.int64))
        sizes = seg[1:batch_size + 1] - seg[:batch_size]
        pad_sizes = ((sizes + tm - 1) // tm) * tm
        pad_off = np.concatenate([[0], np.cumsum(pad_sizes)]).astype(np.int64)
        M_pad = int(pad_off[-1])
        if M_pad == 0:
            return c

        seg_of_row = np.repeat(np.arange(batch_size), pad_sizes)
        local = np.arange(M_pad) - pad_off[seg_of_row]
        row_valid = local < sizes[seg_of_row]
        row_src = np.where(row_valid, seg[seg_of_row] + local, 0).astype(np.int32)
        # expert id per row tile (constant within a tile by construction)
        group_ids = widx[np.repeat(np.arange(batch_size),
                                   pad_sizes // tm)].astype(np.int32)

        # Gather ragged rows into tm-aligned tiles. Rows in the pad slack are
        # dummy copies of row 0; their results are dropped below, so no extra
        # zeroing pass is needed.
        a_pad = jnp.take(a, jnp.asarray(row_src), axis=0)

        # ---- Pallas grouped GEMM hot path (output dtype = c.dtype) ----
        c_pad = _grouped_gemm_padded(a_pad, b, jnp.asarray(group_ids),
                                     jnp.dtype(c.dtype),
                                     tm=tm, tn=tn, tk=tk,
                                     b_is_nk=bool(weight_column_major))

        # ---- scatter valid rows back into c ----
        valid_idx = np.nonzero(row_valid)[0]
        return c.at[jnp.asarray(row_src[valid_idx])].set(
            c_pad[jnp.asarray(valid_idx)])


if __name__ == "__main__":
    key = jax.random.PRNGKey(0)
    ka, kb = jax.random.split(key)

    M, K, N, E = 32, 128, 128, 4
    batch_size = E
    a = jax.random.normal(ka, (M, K), dtype=jnp.float32).astype(jnp.bfloat16)
    b = jax.random.normal(kb, (E, N, K), dtype=jnp.float32).astype(jnp.bfloat16)
    c = jnp.zeros((M, N), dtype=jnp.bfloat16)
    seg_indptr = jnp.asarray([0, 5, 14, 20, 32], dtype=jnp.int32)
    weight_indices = jnp.asarray([2, 0, 3, 1], dtype=jnp.int32)

    runner = GroupedGemmRunner()
    out = runner(a, b, c, batch_size, weight_column_major=True,
                 seg_indptr=seg_indptr, weight_indices=weight_indices)
    out = jax.block_until_ready(out)

    # reference: exact f32 math on the (already-bf16) operands
    a_np = np.asarray(a.astype(jnp.float32))
    b_np = np.asarray(b.astype(jnp.float32))
    ref = np.zeros((M, N), np.float32)
    seg_np = np.asarray(seg_indptr)
    widx_np = np.asarray(weight_indices)
    for s in range(batch_size):
        lo, hi = int(seg_np[s]), int(seg_np[s + 1])
        ref[lo:hi] = a_np[lo:hi] @ b_np[int(widx_np[s])].T
    np.testing.assert_allclose(np.asarray(out.astype(jnp.float32)), ref,
                               rtol=2e-2, atol=2e-2)

    # also exercise the row-major weight path (b stored [E, K, N], no transpose)
    b_rm = jnp.transpose(b, (0, 2, 1))
    out_rm = runner(a, b_rm, c, batch_size, weight_column_major=False,
                    seg_indptr=seg_indptr, weight_indices=weight_indices)
    out_rm = jax.block_until_ready(out_rm)
    np.testing.assert_allclose(np.asarray(out_rm.astype(jnp.float32)), ref,
                               rtol=2e-2, atol=2e-2)

    print("KERNEL_OK")
</pallas_src>

<mosaic_0001>
module attributes {stable_mosaic.version = 11 : i64} {
  func.func @_grouped_gemm_kernel(%arg0: i32, %arg1: i32, %arg2: i32, %arg3: memref<4xi32, #tpu.memory_space<smem>>, %arg4: memref<128x128xbf16, #tpu.memory_space<vmem>>, %arg5: memref<1x128x128xbf16, #tpu.memory_space<vmem>>, %arg6: memref<128x128xbf16, #tpu.memory_space<vmem>>, %arg7: memref<128x128xf32, #tpu.memory_space<vmem>>) attributes {dimension_semantics = [#tpu.dimension_semantics<parallel>, #tpu.dimension_semantics<parallel>, #tpu.dimension_semantics<arbitrary>], iteration_bounds = array<i64: 4, 1, 1>, scalar_prefetch = 1 : i64, scratch_operands = 1 : i64, tpu.core_type = #tpu.core_type<tc>, window_params = [{transform_indices = @transform_0, window_bounds = array<i64: 128, 128>}, {transform_indices = @transform_1, window_bounds = array<i64: 1, 128, 128>}, {transform_indices = @transform_2, window_bounds = array<i64: 128, 128>}]} {
    %c0_i32 = arith.constant 0 : i32
    %0 = arith.cmpi eq, %arg2, %c0_i32 : i32
    %1 = arith.extui %0 : i1 to i32
    %c0_i32_0 = arith.constant 0 : i32
    %2 = arith.cmpi ne, %1, %c0_i32_0 : i32
    scf.if %2 {
      %cst_11 = arith.constant 0.000000e+00 : f32
      %13 = vector.broadcast %cst_11 : f32 to vector<128x128xf32>
      %c0_12 = arith.constant 0 : index
      %c0_13 = arith.constant 0 : index
      %14 = vector.load %arg7[%c0_12, %c0_13] : memref<128x128xf32, #tpu.memory_space<vmem>>, vector<128x128xf32>
      tpu.vector_store %arg7[%c0_12, %c0_13], %13 {strides = array<i32>} : memref<128x128xf32, #tpu.memory_space<vmem>>, vector<128x128xf32>,
    } else {
    }
    %c0 = arith.constant 0 : index
    %c0_1 = arith.constant 0 : index
    %3 = vector.load %arg4[%c0, %c0_1] : memref<128x128xbf16, #tpu.memory_space<vmem>>, vector<128x128xbf16>
    %c0_2 = arith.constant 0 : index
    %c0_3 = arith.constant 0 : index
    %c0_4 = arith.constant 0 : index
    %4 = vector.load %arg5[%c0_2, %c0_3, %c0_4] : memref<1x128x128xbf16, #tpu.memory_space<vmem>>, vector<1x128x128xbf16>
    %5 = vector.shape_cast %4 : vector<1x128x128xbf16> to vector<128x128xbf16>
    %cst = arith.constant dense<0.000000e+00> : vector<128x128xf32>
    %6 = tpu.matmul %3, %5, %cst {dimension_numbers = #tpu.dot_dimension_numbers<[1], [1], [0], [0], [0, 0, 1, 0], [], []>} : vector<128x128xbf16>, vector<128x128xbf16>, vector<128x128xf32> -> vector<128x128xf32>
    %c0_5 = arith.constant 0 : index
    %c0_6 = arith.constant 0 : index
    %7 = vector.load %arg7[%c0_5, %c0_6] : memref<128x128xf32, #tpu.memory_space<vmem>>, vector<128x128xf32>
    %8 = arith.addf %7, %6 : vector<128x128xf32>
    %c0_7 = arith.constant 0 : index
    %c0_8 = arith.constant 0 : index
    %9 = vector.load %arg7[%c0_7, %c0_8] : memref<128x128xf32, #tpu.memory_space<vmem>>, vector<128x128xf32>
    tpu.vector_store %arg7[%c0_7, %c0_8], %8 {strides = array<i32>} : memref<128x128xf32, #tpu.memory_space<vmem>>, vector<128x128xf32>,
    %c0_i32_9 = arith.constant 0 : i32
    %10 = arith.cmpi eq, %arg2, %c0_i32_9 : i32
    %11 = arith.extui %10 : i1 to i32
    %c0_i32_10 = arith.constant 0 : i32
    %12 = arith.cmpi ne, %11, %c0_i32_10 : i32
    scf.if %12 {
      %c0_11 = arith.constant 0 : index
      %c0_12 = arith.constant 0 : index
      %13 = vector.load %arg7[%c0_11, %c0_12] : memref<128x128xf32, #tpu.memory_space<vmem>>, vector<128x128xf32>
      %14 = arith.truncf %13 : vector<128x128xf32> to vector<128x128xbf16>
      %c0_13 = arith.constant 0 : index
      %c0_14 = arith.constant 0 : index
      %15 = vector.load %arg6[%c0_13, %c0_14] : memref<128x128xbf16, #tpu.memory_space<vmem>>, vector<128x128xbf16>
      tpu.vector_store %arg6[%c0_13, %c0_14], %14 {strides = array<i32>} : memref<128x128xbf16, #tpu.memory_space<vmem>>, vector<128x128xbf16>,
    } else {
    }
    return
  }
  func.func @transform_0(%arg0: i32, %arg1: i32, %arg2: i32, %arg3: memref<4xi32, #tpu.memory_space<smem>>) -> (i32, i32) {
    %c0_i32 = arith.constant 0 : i32
    return %arg0, %arg2 : i32, i32
  }
  func.func @transform_1(%arg0: i32, %arg1: i32, %arg2: i32, %arg3: memref<4xi32, #tpu.memory_space<smem>>) -> (i32, i32, i32) {
    %0 = arith.index_cast %arg0 : i32 to index
    %1 = memref.load %arg3[%0] : memref<4xi32, #tpu.memory_space<smem>>
    %c0_i32 = arith.constant 0 : i32
    return %1, %arg1, %arg2 : i32, i32, i32
  }
  func.func @transform_2(%arg0: i32, %arg1: i32, %arg2: i32, %arg3: memref<4xi32, #tpu.memory_space<smem>>) -> (i32, i32) {
    %c0_i32 = arith.constant 0 : i32
    return %arg0, %arg1 : i32, i32
  }
}

</mosaic_0001>

<llo_original>
// kernel: tpu_custom_call.1
$region0: #{tpu_custom_call.1}
  #allocation0 [shape = 'u32[]', space=smem, size = 0x4, offset = 0x4, fixed_abs, tag = 'smem constant byte address 0x4 - core index']
  #allocation1 [shape = 'u32[72,128]{1,0:T(1,128)}', space=vmem, size = 0x9000, scoped, tag = 'internal scratch']
  #allocation2 [shape = 'f32[128,128]{1,0:T(8,128)}', space=vmem, size = 0x10000, scoped, tag = 'scratch operand']
  #allocation3 [shape = 's32[1]{0}', space=sflag, size = 0x4, scoped, tag = 'scoped memory for tpu_custom_call.1']
  #allocation4 [shape = 'u8[512]{0}', space=smem, size = 0x200, scoped, tag = 'prefetched SMEM operand 0']
  %s0 = inlined_call_operand.hbm [shape: s32[4], index: 0, kind: input, shape index: {}]
  %s1 = inlined_call_operand.hbm [shape: bf16[512,128], index: 1, kind: input, shape index: {}]
  %s2 = inlined_call_operand.hbm [shape: bf16[4,128,128], index: 2, kind: input, shape index: {}]
  %s3 = inlined_call_operand.hbm [shape: bf16[512,128], index: 3, kind: output, shape index: {}]
  %s4 = sld [smem:[#allocation0]]
  $region57: #{tpu_custom_call.1} parent=0
    _
  %s6 = ssub.s32 1, %s4
  %s7 = scalar_select 0, %s6, %s4
  %s9 = sshll.u32 %s0, 4
  %s10 = int_to_ptr.hbm [resolvable:$true] %s9
  %12 = dma.hbm_to_smem %s10, 16, [#allocation4], [#allocation3]
  %14 = dma.done [#allocation3], 16
  %15 = sfence
  $region1: #{tpu_custom_call.1} parent=0
    #allocation5 [shape = 'u8[65536]{0}', space=vmem, size = 0x10000, scoped, tag = 'input window, operand 1']
    #allocation6 [shape = 's32[2]{0}', space=sflag, size = 0x8, scoped, tag = 'scoped memory for tpu_custom_call.1']
    #allocation7 [shape = 's32[2]{0}', space=sflag, size = 0x8, scoped, tag = 'scoped memory for tpu_custom_call.1']
    #allocation8 [shape = 'u8[65536]{0}', space=vmem, size = 0x10000, scoped, tag = 'input window, operand 2']
    #allocation9 [shape = 's32[2]{0}', space=sflag, size = 0x8, scoped, tag = 'scoped memory for tpu_custom_call.1']
    #allocation10 [shape = 'u8[65536]{0}', space=vmem, size = 0x10000, scoped, tag = 'output window, operand 0']
    %16 = vsyncpa [#allocation6], 0
    %s17 = scalar_lea.sflag [#allocation6], 1
    %18 = vsyncpa %s17, 0
    %19 = vsyncpa [#allocation9], 0
    %s20 = scalar_lea.sflag [#allocation9], 1
    %21 = vsyncpa %s20, 0
    %22 = vsyncpa [#allocation7], 0
    %s23 = scalar_lea.sflag [#allocation7], 1
    %24 = vsyncpa %s23, 0
    loop: start=0, step=1, limit=6
    $region2: #{tpu_custom_call.1} parent=1 // loop_pre_header
      _
    $region3: #{tpu_custom_call.1} parent=1 // loop_header
      %s26 = sphi 0, %s30
      %p27 = scmp.ge.s32.totalorder %s26, 6
      %s33 = sphi 0, %s52
      %s34 = sphi 0, %s48
      %s35 = sphi 0, %s44
      %s36 = sphi 0, %s33
      %s37 = sphi 0, %s34
      %s38 = sphi 0, %s35
      %s39 = sphi 0, %s36
      %s40 = sphi 0, %s37
      %s41 = sphi 0, %s38
      %s57 = sphi 0, %s59
      %s60 = sphi 0, %s57
      %s61 = sphi 0, %s60
      %s77 = sphi 0, %s61
      %s89 = sphi 0, %s91
      %s92 = sphi 0, %s89
      %s93 = sphi 0, %s92
      %s109 = sphi 0, %s93
      %s117 = sphi 0, %s119
      %s120 = sphi 0, %s117
      %s121 = sphi 0, %s120
      %s137 = sphi 0, %s121
    $region4: #{tpu_custom_call.1} parent=1 // loop_header_branch
      %29 = sbr.rel (%p27) target = $region8
    $region5: #{tpu_custom_call.1} parent=1 // loop_body
      %s31 = ssub.s32 %s26, 1
      %s32 = ssub.s32 %s26, 2
      %s42 = sadd.s32 1, %s35
      %p43 = scmp.ge.s32.totalorder %s42, 1
      %s44 = scalar_select %p43, 0, %s42
      %s45 = sadd.s32 1, %s34
      %s46 = scalar_select %p43, %s45, %s34
      %p47 = scmp.ge.s32.totalorder %s46, 1
      %s48 = scalar_select %p47, 0, %s46
      %s49 = sadd.s32 1, %s33
      %s50 = scalar_select %p47, %s49, %s33
      %p51 = scmp.ge.s32.totalorder %s50, 4
      %s52 = scalar_select %p51, 0, %s50
      %s53 = ssub.s32 %s33, %s52
      %s54 = ssub.s32 %s35, %s44
      %s55 = sor.u32 %s53, %s54
      %p56 = scmp.eq.s32.totalorder %s55, 0
      %s58 = sadd.s32 %s57, 1
      %s59 = scalar_select %p56, %s57, %s58
      %p62 = pneg %p56
      %p63 = scmp.eq.s32.totalorder %s26, 3
      %p64 = por %p62, %p63
      %p65 = scmp.ne.s32.totalorder %s57, %s60
      %p66 = scmp.eq.s32.totalorder %s26, 0
      %p67 = por %p65, %p66
      %p68 = scmp.ne.s32.totalorder %s57, %s60
      %p69 = scmp.eq.s32.totalorder %s31, 3
      %p70 = por %p68, %p69
      %p71 = scmp.ne.s32.totalorder %s60, %s61
      %p72 = scmp.eq.s32.totalorder %s31, 0
      %p73 = por %p71, %p72
      %p74 = scmp.ne.s32.totalorder %s60, %s61
      %p75 = scmp.eq.s32.totalorder %s32, 3
      %p76 = por %p74, %p75
      %p78 = scmp.ne.s32.totalorder %s61, %s77
      %p79 = scmp.eq.s32.totalorder %s32, 0
      %p80 = por %p78, %p79
      %s81 = sld [smem:[#allocation4 + %s33]]
      %s82 = sld [smem:[#allocation4 + %s52]]
      %s83 = ssub.s32 %s81, %s82
      %s84 = ssub.s32 %s34, %s48
      %s85 = sor.u32 %s83, %s84
      %s86 = ssub.s32 %s35, %s44
      %s87 = sor.u32 %s85, %s86
      %p88 = scmp.eq.s32.totalorder %s87, 0
      %s90 = sadd.s32 %s89, 1
      %s91 = scalar_select %p88, %s89, %s90
      %p94 = pneg %p88
      %p95 = scmp.eq.s32.totalorder %s26, 3
      %p96 = por %p94, %p95
      %p97 = scmp.ne.s32.totalorder %s89, %s92
      %p98 = scmp.eq.s32.totalorder %s26, 0
      %p99 = por %p97, %p98
      %p100 = scmp.ne.s32.totalorder %s89, %s92
      %p101 = scmp.eq.s32.totalorder %s31, 3
      %p102 = por %p100, %p101
      %p103 = scmp.ne.s32.totalorder %s92, %s93
      %p104 = scmp.eq.s32.totalorder %s31, 0
      %p105 = por %p103, %p104
      %p106 = scmp.ne.s32.totalorder %s92, %s93
      %p107 = scmp.eq.s32.totalorder %s32, 3
      %p108 = por %p106, %p107
      %p110 = scmp.ne.s32.totalorder %s93, %s109
      %p111 = scmp.eq.s32.totalorder %s32, 0
      %p112 = por %p110, %p111
      %s113 = ssub.s32 %s33, %s52
      %s114 = ssub.s32 %s34, %s48
      %s115 = sor.u32 %s113, %s114
      %p116 = scmp.eq.s32.totalorder %s115, 0
      %s118 = sadd.s32 %s117, 1
      %s119 = scalar_select %p116, %s117, %s118
      %p122 = pneg %p116
      %p123 = scmp.eq.s32.totalorder %s26, 3
      %p124 = por %p122, %p123
      %p125 = scmp.ne.s32.totalorder %s117, %s120
      %p126 = scmp.eq.s32.totalorder %s26, 0
      %p127 = por %p125, %p126
      %p128 = scmp.ne.s32.totalorder %s117, %s120
      %p129 = scmp.eq.s32.totalorder %s31, 3
      %p130 = por %p128, %p129
      %p131 = scmp.ne.s32.totalorder %s120, %s121
      %p132 = scmp.eq.s32.totalorder %s31, 0
      %p133 = por %p131, %p132
      %p134 = scmp.ne.s32.totalorder %s120, %s121
      %p135 = scmp.eq.s32.totalorder %s32, 3
      %p136 = por %p134, %p135
      %p138 = scmp.ne.s32.totalorder %s121, %s137
      %p139 = scmp.eq.s32.totalorder %s32, 0
      %p140 = por %p138, %p139
      %p141 = scmp.le.s32.totalorder 1, %s26
      %p142 = scmp.lt.s32.totalorder %s26, 5
      %p143 = pnand %p141, %p142
      %p144 = pneg %p143
      // Predicated region
      $region9: #{tpu_custom_call.1} parent=5 // pred_check
        _
      $region10: #{tpu_custom_call.1} parent=5 // pred_check_branch
        %146 = sbr.rel (%p143) target = $region12
      $region11: #{tpu_custom_call.1} parent=5 // pred_region
        %s147 = ssub.s32 %s26, 1
      $region12: #{tpu_custom_call.1} parent=5 // pred_fallthru
        _
      %p148 = scmp.lt.s32.totalorder %s26, 4
      // Predicated region
      $region13: #{tpu_custom_call.1} parent=5 // pred_check
        %p149 = pneg %p148
      $region14: #{tpu_custom_call.1} parent=5 // pred_check_branch
        %151 = sbr.rel (%p149) target = $region16
      $region15: #{tpu_custom_call.1} parent=5 // pred_region
        // Predicated region
        $region17: #{tpu_custom_call.1} parent=15 // pred_check
          %p152 = pneg %p67
        $region18: #{tpu_custom_call.1} parent=15 // pred_check_branch
          %154 = sbr.rel (%p152) target = $region20
        $region19: #{tpu_custom_call.1} parent=15 // pred_region
          %s155 = sand.u32 %s57, 1
          %s156 = scalar_lea.sflag [#allocation6], %s155
          %s157 = sand.u32 %s57, 1
          %s158 = smul.addr %s157, 64
          %s159 = scalar_lea.vmem [#allocation5], %s158
          %s160 = smul.u32 16, %s33
          %162 = vsyncadd %s156, 0
          %s163 = sadd.s32 %s35, %s160
          %s164 = smul.addr %s163, 4
          %s165 = scalar_lea.hbm %s1, %s164
          %s166 = sshll.u32 %s165, 4
          %s167 = int_to_ptr.hbm [resolvable:$true] %s166
          %s168 = sshll.u32 %s159, 4
          %s169 = int_to_ptr.vmem [resolvable:$true] %s168
          %174 = dma.hbm_to_vmem [thread:$0]  %s167, 1024, %s169, %s156, 64, 64, 4
        $region20: #{tpu_custom_call.1} parent=15 // pred_fallthru
          _
        // Predicated region
        $region21: #{tpu_custom_call.1} parent=15 // pred_check
          %p175 = pneg %p99
        $region22: #{tpu_custom_call.1} parent=15 // pred_check_branch
          %177 = sbr.rel (%p175) target = $region24
        $region23: #{tpu_custom_call.1} parent=15 // pred_region
          %s178 = sand.u32 %s89, 1
          %s179 = scalar_lea.sflag [#allocation9], %s178
          %s180 = sand.u32 %s89, 1
          %s181 = smul.addr %s180, 64
          %s182 = scalar_lea.vmem [#allocation8], %s181
          %s183 = sld [smem:[#allocation4 + %s33]]
          %s184 = smul.u32 16, %s34
          %186 = vsyncadd %s179, 0
          %s187 = sadd.s32 %s35, %s184
          %s188 = smul.addr %s183, 16
          %s189 = sadd.s32 %s187, %s188
          %s190 = smul.addr %s189, 4
          %s191 = scalar_lea.hbm %s2, %s190
          %s192 = sshll.u32 %s191, 4
          %s193 = int_to_ptr.hbm [resolvable:$true] %s192
          %s194 = sshll.u32 %s182, 4
          %s195 = int_to_ptr.vmem [resolvable:$true] %s194
          %200 = dma.hbm_to_vmem [thread:$0]  %s193, 1024, %s195, %s179, 64, 64, 4
        $region24: #{tpu_custom_call.1} parent=15 // pred_fallthru
          _
      $region16: #{tpu_custom_call.1} parent=5 // pred_fallthru
        _
      %p201 = scmp.le.s32.totalorder 1, %s26
      %p202 = scmp.lt.s32.totalorder %s26, 5
      %p203 = pnand %p201, %p202
      %p204 = pneg %p203
      // Predicated region
      $region25: #{tpu_custom_call.1} parent=5 // pred_check
        _
      $region26: #{tpu_custom_call.1} parent=5 // pred_check_branch
        %206 = sbr.rel (%p203) target = $region28
      $region27: #{tpu_custom_call.1} parent=5 // pred_region
        %s207 = ssub.s32 %s26, 1
        %s208 = sand.u32 %s60, 1
        %s209 = scalar_lea.sflag [#allocation6], %s208
        %s210 = sand.u32 %s60, 1
        %s211 = smul.addr %s210, 64
        %s212 = scalar_lea.vmem [#allocation5], %s211
        // Predicated region
        $region29: #{tpu_custom_call.1} parent=27 // pred_check
          %p213 = pneg %p73
        $region30: #{tpu_custom_call.1} parent=27 // pred_check_branch
          %215 = sbr.rel (%p213) target = $region32
        $region31: #{tpu_custom_call.1} parent=27 // pred_region
          %217 = dma.done %s209, 1024
        $region32: #{tpu_custom_call.1} parent=27 // pred_fallthru
          _
        %s218 = sand.u32 %s92, 1
        %s219 = scalar_lea.sflag [#allocation9], %s218
        %s220 = sand.u32 %s92, 1
        %s221 = smul.addr %s220, 64
        %s222 = scalar_lea.vmem [#allocation8], %s221
        // Predicated region
        $region33: #{tpu_custom_call.1} parent=27 // pred_check
          %p223 = pneg %p105
        $region34: #{tpu_custom_call.1} parent=27 // pred_check_branch
          %225 = sbr.rel (%p223) target = $region36
        $region35: #{tpu_custom_call.1} parent=27 // pred_region
          %227 = dma.done %s219, 1024
        $region36: #{tpu_custom_call.1} parent=27 // pred_fallthru
          _
        %s228 = sand.u32 %s60, 1
        %s229 = scalar_lea.sflag [#allocation6], %s228
        %s230 = sand.u32 %s60, 1
        %s231 = smul.addr %s230, 64
        %s232 = scalar_lea.vmem [#allocation5], %s231
        %p233 = pneg %p73
        %p234 = pneg %p70
        %s235 = sand.u32 %s92, 1
        %s236 = scalar_lea.sflag [#allocation9], %s235
        %s237 = sand.u32 %s92, 1
        %s238 = smul.addr %s237, 64
        %s239 = scalar_lea.vmem [#allocation8], %s238
        %p240 = pneg %p105
        %p241 = pneg %p102
        %p242 = pneg %p133
        %p243 = pneg %p130
        %s244 = sand.u32 %s120, 1
        %s245 = scalar_lea.sflag [#allocation7], %s244
        %s246 = sand.u32 %s120, 1
        %s247 = smul.addr %s246, 64
        %s248 = scalar_lea.vmem [#allocation10], %s247
        %s249 = smul.u32 16, %s36
        %s250 = sld [smem:[#allocation4 + %s36]]
        %s251 = smul.u32 16, %s37
        %s252 = smul.u32 16, %s36
        %p253 = scmp.eq.s32.totalorder %s38, 0
        // Predicated region
        $region37: #{tpu_custom_call.1} parent=27 // pred_check
          %p254 = pneg %p253
        $region38: #{tpu_custom_call.1} parent=27 // pred_check_branch
          %256 = sbr.rel (%p254) target = $region40
        $region39: #{tpu_custom_call.1} parent=27 // pred_region
          %257 = vst [vmem:[#allocation2] sm:$0xff] 0.0
          %258 = vst [vmem:[#allocation2 + $0x8] sm:$0xff] 0.0
          %259 = vst [vmem:[#allocation2 + $0x10] sm:$0xff] 0.0
          %260 = vst [vmem:[#allocation2 + $0x18] sm:$0xff] 0.0
          %261 = vst [vmem:[#allocation2 + $0x20] sm:$0xff] 0.0
          %262 = vst [vmem:[#allocation2 + $0x28] sm:$0xff] 0.0
          %263 = vst [vmem:[#allocation2 + $0x30] sm:$0xff] 0.0
          %264 = vst [vmem:[#allocation2 + $0x38] sm:$0xff] 0.0
          %265 = vst [vmem:[#allocation2 + $0x40] sm:$0xff] 0.0
          %266 = vst [vmem:[#allocation2 + $0x48] sm:$0xff] 0.0
          %267 = vst [vmem:[#allocation2 + $0x50] sm:$0xff] 0.0
          %268 = vst [vmem:[#allocation2 + $0x58] sm:$0xff] 0.0
          %269 = vst [vmem:[#allocation2 + $0x60] sm:$0xff] 0.0
          %270 = vst [vmem:[#allocation2 + $0x68] sm:$0xff] 0.0
          %271 = vst [vmem:[#allocation2 + $0x70] sm:$0xff] 0.0
          %272 = vst [vmem:[#allocation2 + $0x78] sm:$0xff] 0.0
        $region40: #{tpu_custom_call.1} parent=27 // pred_fallthru
          _
        %v273 = vld [vmem:[%s212] sm:$0xf]
        %v274 = vld [vmem:[%s212 + $0x4] sm:$0xf]
        %v275 = vld [vmem:[%s212 + $0x8] sm:$0xf]
        %v276 = vld [vmem:[%s212 + $0xc] sm:$0xf]
        %v277 = vld [vmem:[%s212 + $0x10] sm:$0xf]
        %v278 = vld [vmem:[%s212 + $0x14] sm:$0xf]
        %v279 = vld [vmem:[%s212 + $0x18] sm:$0xf]
        %v280 = vld [vmem:[%s212 + $0x1c] sm:$0xf]
        %v281 = vld [vmem:[%s212 + $0x20] sm:$0xf]
        %v282 = vld [vmem:[%s212 + $0x24] sm:$0xf]
        %v283 = vld [vmem:[%s212 + $0x28] sm:$0xf]
        %v284 = vld [vmem:[%s212 + $0x2c] sm:$0xf]
        %v285 = vld [vmem:[%s212 + $0x30] sm:$0xf]
        %v286 = vld [vmem:[%s212 + $0x34] sm:$0xf]
        %v287 = vld [vmem:[%s212 + $0x38] sm:$0xf]
        %v288 = vld [vmem:[%s212 + $0x3c] sm:$0xf]
        %v289 = vld [vmem:[%s222] sm:$0xf]
        %v290 = vld [vmem:[%s222 + $0x4] sm:$0xf]
        %v291 = vld [vmem:[%s222 + $0x8] sm:$0xf]
        %v292 = vld [vmem:[%s222 + $0xc] sm:$0xf]
        %v293 = vld [vmem:[%s222 + $0x10] sm:$0xf]
        %v294 = vld [vmem:[%s222 + $0x14] sm:$0xf]
        %v295 = vld [vmem:[%s222 + $0x18] sm:$0xf]
        %v296 = vld [vmem:[%s222 + $0x1c] sm:$0xf]
        %v297 = vld [vmem:[%s222 + $0x20] sm:$0xf]
        %v298 = vld [vmem:[%s222 + $0x24] sm:$0xf]
        %v299 = vld [vmem:[%s222 + $0x28] sm:$0xf]
        %v300 = vld [vmem:[%s222 + $0x2c] sm:$0xf]
        %v301 = vld [vmem:[%s222 + $0x30] sm:$0xf]
        %v302 = vld [vmem:[%s222 + $0x34] sm:$0xf]
        %v303 = vld [vmem:[%s222 + $0x38] sm:$0xf]
        %v304 = vld [vmem:[%s222 + $0x3c] sm:$0xf]
        %v321 = vunpack.c.l.b16 %v273
        %v322 = vunpack.c.l.b16 %v274
        %v323 = vunpack.c.l.b16 %v275
        %v324 = vunpack.c.l.b16 %v276
        %v325 = vunpack.c.l.b16 %v277
        %v326 = vunpack.c.l.b16 %v278
        %v327 = vunpack.c.l.b16 %v279
        %v328 = vunpack.c.l.b16 %v280
        %v329 = vunpack.c.l.b16 %v281
        %v330 = vunpack.c.l.b16 %v282
        %v331 = vunpack.c.l.b16 %v283
        %v332 = vunpack.c.l.b16 %v284
        %v333 = vunpack.c.l.b16 %v285
        %v334 = vunpack.c.l.b16 %v286
        %v335 = vunpack.c.l.b16 %v287
        %v336 = vunpack.c.l.b16 %v288
        %v337 = vpack.c.b16 %v322, %v321
        %v338 = vpack.c.b16 %v324, %v323
        %v339 = vpack.c.b16 %v326, %v325
        %v340 = vpack.c.b16 %v328, %v327
        %v341 = vpack.c.b16 %v330, %v329
        %v342 = vpack.c.b16 %v332, %v331
        %v343 = vpack.c.b16 %v334, %v333
        %v344 = vpack.c.b16 %v336, %v335
        %v369 = vunpack.c.l.b16 %v289
        %v370 = vunpack.c.l.b16 %v290
        %v371 = vunpack.c.l.b16 %v291
        %v372 = vunpack.c.l.b16 %v292
        %v373 = vunpack.c.l.b16 %v293
        %v374 = vunpack.c.l.b16 %v294
        %v375 = vunpack.c.l.b16 %v295
        %v376 = vunpack.c.l.b16 %v296
        %v377 = vunpack.c.l.b16 %v297
        %v378 = vunpack.c.l.b16 %v298
        %v379 = vunpack.c.l.b16 %v299
        %v380 = vunpack.c.l.b16 %v300
        %v381 = vunpack.c.l.b16 %v301
        %v382 = vunpack.c.l.b16 %v302
        %v383 = vunpack.c.l.b16 %v303
        %v384 = vunpack.c.l.b16 %v304
        %v385 = vpack.c.b16 %v370, %v369
        %v386 = vpack.c.b16 %v372, %v371
        %v387 = vpack.c.b16 %v374, %v373
        %v388 = vpack.c.b16 %v376, %v375
        %v389 = vpack.c.b16 %v378, %v377
        %v390 = vpack.c.b16 %v380, %v379
        %v391 = vpack.c.b16 %v382, %v381
        %v392 = vpack.c.b16 %v384, %v383
        %401 = vmatpush.bf16.xpose.msra.mxu0 %v392
        %402 = vmatpush.bf16.xpose.msra.mxu0 %v391
        %403 = vmatpush.bf16.xpose.msra.mxu0 %v390
        %404 = vmatpush.bf16.xpose.msra.mxu0 %v389
        %405 = vmatpush.bf16.xpose.msra.mxu0 %v388
        %406 = vmatpush.bf16.xpose.msra.mxu0 %v387
        %407 = vmatpush.bf16.xpose.msra.mxu0 %v386
        %408 = vmatpush.bf16.xpose.msra.mxu0 %v385
        %409 = vmatmul.bf16.gmra.mxu0 %v337
        %v410 = vpop.f32.mrf.mxu0
        %v411 = vadd.f32 0.0, %v410
        %v412 = vpop.f32.mrf.mxu0
        %v413 = vadd.f32 0.0, %v412
        %414 = vmatmul.bf16.gmra.mxu0 %v338
        %v415 = vpop.f32.mrf.mxu0
        %v416 = vadd.f32 0.0, %v415
        %v417 = vpop.f32.mrf.mxu0
        %v418 = vadd.f32 0.0, %v417
        %419 = vmatmul.bf16.gmra.mxu0 %v339
        %v420 = vpop.f32.mrf.mxu0
        %v421 = vadd.f32 0.0, %v420
        %v422 = vpop.f32.mrf.mxu0
        %v423 = vadd.f32 0.0, %v422
        %424 = vmatmul.bf16.gmra.mxu0 %v340
        %v425 = vpop.f32.mrf.mxu0
        %v426 = vadd.f32 0.0, %v425
        %v427 = vpop.f32.mrf.mxu0
        %v428 = vadd.f32 0.0, %v427
        %429 = vmatmul.bf16.gmra.mxu0 %v341
        %v430 = vpop.f32.mrf.mxu0
        %v431 = vadd.f32 0.0, %v430
        %v432 = vpop.f32.mrf.mxu0
        %v433 = vadd.f32 0.0, %v432
        %434 = vmatmul.bf16.gmra.mxu0 %v342
        %v435 = vpop.f32.mrf.mxu0
        %v436 = vadd.f32 0.0, %v435
        %v437 = vpop.f32.mrf.mxu0
        %v438 = vadd.f32 0.0, %v437
        %439 = vmatmul.bf16.gmra.mxu0 %v343
        %v440 = vpop.f32.mrf.mxu0
        %v441 = vadd.f32 0.0, %v440
        %v442 = vpop.f32.mrf.mxu0
        %v443 = vadd.f32 0.0, %v442
        %444 = vmatmul.bf16.gmra.mxu0 %v344
        %v445 = vpop.f32.mrf.mxu0
        %v446 = vadd.f32 0.0, %v445
        %v447 = vpop.f32.mrf.mxu0
        %v448 = vadd.f32 0.0, %v447
        %449 = vdwg.mxu0
        %v450 = vld [vmem:[#allocation2] sm:$0xff]
        %v451 = vld [vmem:[#allocation2 + $0x8] sm:$0xff]
        %v452 = vld [vmem:[#allocation2 + $0x10] sm:$0xff]
        %v453 = vld [vmem:[#allocation2 + $0x18] sm:$0xff]
        %v454 = vld [vmem:[#allocation2 + $0x20] sm:$0xff]
        %v455 = vld [vmem:[#allocation2 + $0x28] sm:$0xff]
        %v456 = vld [vmem:[#allocation2 + $0x30] sm:$0xff]
        %v457 = vld [vmem:[#allocation2 + $0x38] sm:$0xff]
        %v458 = vld [vmem:[#allocation2 + $0x40] sm:$0xff]
        %v459 = vld [vmem:[#allocation2 + $0x48] sm:$0xff]
        %v460 = vld [vmem:[#allocation2 + $0x50] sm:$0xff]
        %v461 = vld [vmem:[#allocation2 + $0x58] sm:$0xff]
        %v462 = vld [vmem:[#allocation2 + $0x60] sm:$0xff]
        %v463 = vld [vmem:[#allocation2 + $0x68] sm:$0xff]
        %v464 = vld [vmem:[#allocation2 + $0x70] sm:$0xff]
        %v465 = vld [vmem:[#allocation2 + $0x78] sm:$0xff]
        %v466 = vadd.f32 %v450, %v411
        %v467 = vadd.f32 %v451, %v413
        %v468 = vadd.f32 %v452, %v416
        %v469 = vadd.f32 %v453, %v418
        %v470 = vadd.f32 %v454, %v421
        %v471 = vadd.f32 %v455, %v423
        %v472 = vadd.f32 %v456, %v426
        %v473 = vadd.f32 %v457, %v428
        %v474 = vadd.f32 %v458, %v431
        %v475 = vadd.f32 %v459, %v433
        %v476 = vadd.f32 %v460, %v436
        %v477 = vadd.f32 %v461, %v438
        %v478 = vadd.f32 %v462, %v441
        %v479 = vadd.f32 %v463, %v443
        %v480 = vadd.f32 %v464, %v446
        %v481 = vadd.f32 %v465, %v448
        %482 = vst [vmem:[#allocation2] sm:$0xff] %v466
        %483 = vst [vmem:[#allocation2 + $0x8] sm:$0xff] %v467
        %484 = vst [vmem:[#allocation2 + $0x10] sm:$0xff] %v468
        %485 = vst [vmem:[#allocation2 + $0x18] sm:$0xff] %v469
        %486 = vst [vmem:[#allocation2 + $0x20] sm:$0xff] %v470
        %487 = vst [vmem:[#allocation2 + $0x28] sm:$0xff] %v471
        %488 = vst [vmem:[#allocation2 + $0x30] sm:$0xff] %v472
        %489 = vst [vmem:[#allocation2 + $0x38] sm:$0xff] %v473
        %490 = vst [vmem:[#allocation2 + $0x40] sm:$0xff] %v474
        %491 = vst [vmem:[#allocation2 + $0x48] sm:$0xff] %v475
        %492 = vst [vmem:[#allocation2 + $0x50] sm:$0xff] %v476
        %493 = vst [vmem:[#allocation2 + $0x58] sm:$0xff] %v477
        %494 = vst [vmem:[#allocation2 + $0x60] sm:$0xff] %v478
        %495 = vst [vmem:[#allocation2 + $0x68] sm:$0xff] %v479
        %496 = vst [vmem:[#allocation2 + $0x70] sm:$0xff] %v480
        %497 = vst [vmem:[#allocation2 + $0x78] sm:$0xff] %v481
        // Predicated region
        $region41: #{tpu_custom_call.1} parent=27 // pred_check
          %p498 = pneg %p253
        $region42: #{tpu_custom_call.1} parent=27 // pred_check_branch
          %500 = sbr.rel (%p498) target = $region44
        $region43: #{tpu_custom_call.1} parent=27 // pred_region
          %v501 = vld [vmem:[#allocation2] sm:$0xff]
          %v502 = vld [vmem:[#allocation2 + $0x8] sm:$0xff]
          %v503 = vld [vmem:[#allocation2 + $0x10] sm:$0xff]
          %v504 = vld [vmem:[#allocation2 + $0x18] sm:$0xff]
          %v505 = vld [vmem:[#allocation2 + $0x20] sm:$0xff]
          %v506 = vld [vmem:[#allocation2 + $0x28] sm:$0xff]
          %v507 = vld [vmem:[#allocation2 + $0x30] sm:$0xff]
          %v508 = vld [vmem:[#allocation2 + $0x38] sm:$0xff]
          %v509 = vld [vmem:[#allocation2 + $0x40] sm:$0xff]
          %v510 = vld [vmem:[#allocation2 + $0x48] sm:$0xff]
          %v511 = vld [vmem:[#allocation2 + $0x50] sm:$0xff]
          %v512 = vld [vmem:[#allocation2 + $0x58] sm:$0xff]
          %v513 = vld [vmem:[#allocation2 + $0x60] sm:$0xff]
          %v514 = vld [vmem:[#allocation2 + $0x68] sm:$0xff]
          %v515 = vld [vmem:[#allocation2 + $0x70] sm:$0xff]
          %v516 = vld [vmem:[#allocation2 + $0x78] sm:$0xff]
          %v517 = vpack.c.bf16 %v501, %v501
          %v518 = vpack.c.bf16 %v502, %v502
          %v519 = vpack.c.bf16 %v503, %v503
          %v520 = vpack.c.bf16 %v504, %v504
          %v521 = vpack.c.bf16 %v505, %v505
          %v522 = vpack.c.bf16 %v506, %v506
          %v523 = vpack.c.bf16 %v507, %v507
          %v524 = vpack.c.bf16 %v508, %v508
          %v525 = vpack.c.bf16 %v509, %v509
          %v526 = vpack.c.bf16 %v510, %v510
          %v527 = vpack.c.bf16 %v511, %v511
          %v528 = vpack.c.bf16 %v512, %v512
          %v529 = vpack.c.bf16 %v513, %v513
          %v530 = vpack.c.bf16 %v514, %v514
          %v531 = vpack.c.bf16 %v515, %v515
          %v532 = vpack.c.bf16 %v516, %v516
          %533 = vst [vmem:[%s248] sm:$0xf] %v517
          %534 = vst [vmem:[%s248 + $0x4] sm:$0xf] %v518
          %535 = vst [vmem:[%s248 + $0x8] sm:$0xf] %v519
          %536 = vst [vmem:[%s248 + $0xc] sm:$0xf] %v520
          %537 = vst [vmem:[%s248 + $0x10] sm:$0xf] %v521
          %538 = vst [vmem:[%s248 + $0x14] sm:$0xf] %v522
          %539 = vst [vmem:[%s248 + $0x18] sm:$0xf] %v523
          %540 = vst [vmem:[%s248 + $0x1c] sm:$0xf] %v524
          %541 = vst [vmem:[%s248 + $0x20] sm:$0xf] %v525
          %542 = vst [vmem:[%s248 + $0x24] sm:$0xf] %v526
          %543 = vst [vmem:[%s248 + $0x28] sm:$0xf] %v527
          %544 = vst [vmem:[%s248 + $0x2c] sm:$0xf] %v528
          %545 = vst [vmem:[%s248 + $0x30] sm:$0xf] %v529
          %546 = vst [vmem:[%s248 + $0x34] sm:$0xf] %v530
          %547 = vst [vmem:[%s248 + $0x38] sm:$0xf] %v531
          %548 = vst [vmem:[%s248 + $0x3c] sm:$0xf] %v532
        $region44: #{tpu_custom_call.1} parent=27 // pred_fallthru
          _
        %s549 = sand.u32 %s120, 1
        %s550 = scalar_lea.sflag [#allocation7], %s549
        %s551 = sand.u32 %s120, 1
        %s552 = smul.addr %s551, 64
        %s553 = scalar_lea.vmem [#allocation10], %s552
        // Predicated region
        $region45: #{tpu_custom_call.1} parent=27 // pred_check
          %p554 = pneg %p130
        $region46: #{tpu_custom_call.1} parent=27 // pred_check_branch
          %556 = sbr.rel (%p554) target = $region48
        $region47: #{tpu_custom_call.1} parent=27 // pred_region
          %s557 = smul.u32 16, %s36
          %559 = vsyncadd %s550, 0
          %s560 = sadd.s32 %s37, %s557
          %s561 = smul.addr %s560, 4
          %s562 = scalar_lea.hbm %s3, %s561
          %s563 = sshll.u32 %s553, 4
          %s564 = int_to_ptr.vmem [resolvable:$true] %s563
          %s565 = sshll.u32 %s562, 4
          %s566 = int_to_ptr.hbm [resolvable:$true] %s565
          %571 = dma.vmem_to_hbm [thread:$0]  %s564, 1024, %s566, %s550, 64, 64, 4
        $region48: #{tpu_custom_call.1} parent=27 // pred_fallthru
          _
      $region28: #{tpu_custom_call.1} parent=5 // pred_fallthru
        _
      %p572 = scmp.le.s32.totalorder 2, %s26
      // Predicated region
      $region49: #{tpu_custom_call.1} parent=5 // pred_check
        %p573 = pneg %p572
      $region50: #{tpu_custom_call.1} parent=5 // pred_check_branch
        %575 = sbr.rel (%p573) target = $region52
      $region51: #{tpu_custom_call.1} parent=5 // pred_region
        %s576 = ssub.s32 %s26, 2
        // Predicated region
        $region53: #{tpu_custom_call.1} parent=51 // pred_check
          %p577 = pneg %p136
        $region54: #{tpu_custom_call.1} parent=51 // pred_check_branch
          %579 = sbr.rel (%p577) target = $region56
        $region55: #{tpu_custom_call.1} parent=51 // pred_region
          %s580 = sand.u32 %s121, 1
          %s581 = scalar_lea.sflag [#allocation7], %s580
          %s582 = sand.u32 %s121, 1
          %s583 = smul.addr %s582, 64
          %s584 = scalar_lea.vmem [#allocation10], %s583
          %586 = dma.done %s581, 1024
        $region56: #{tpu_custom_call.1} parent=51 // pred_fallthru
          _
      $region52: #{tpu_custom_call.1} parent=5 // pred_fallthru
        _
    $region6: #{tpu_custom_call.1} parent=1 // loop_footer
      %s30 = sadd.s32 1, %s26
    $region7: #{tpu_custom_call.1} parent=1 // loop_footer_branch
      %25 = sbr.rel target = $region3
    $region8: #{tpu_custom_call.1} parent=1 // loop_exit
      _
    %587 = vsyncpa [#allocation6], 1
    %s588 = scalar_lea.sflag [#allocation6], 1
    %589 = vsyncpa %s588, 1
    %590 = vsyncpa [#allocation9], 1
    %s591 = scalar_lea.sflag [#allocation9], 1
    %592 = vsyncpa %s591, 1
    %593 = vsyncpa [#allocation7], 1
    %s594 = scalar_lea.sflag [#allocation7], 1
    %595 = vsyncpa %s594, 1

</llo_original>
